<compile_context>
chip_gen: v7x
topology: tpu7x:2x2x1
jax: 0.10.0
libtpu: 0.0.40
codegen_flags: <defaults>
</compile_context>

<pallas_src>
import jax
import jax.numpy as jnp
from jax import lax
from jax.experimental import pallas as pl
from jax.experimental.pallas import tpu as pltpu

_NEG_LARGE = -1e30  # logit value for padded vocab columns (exp() underflows to 0)


def _pick_batch_tile(batch: int, cap: int = 64) -> int:
    """Whole batch if small, else the largest multiple-of-8 divisor <= cap."""
    if batch <= cap:
        return batch
    best = None
    for tb in range(8, cap + 1, 8):
        if batch % tb == 0:
            best = tb
    return best if best is not None else batch


def _pick_seq_tile(seq_len: int, tb: int, vp: int,
                   budget_bytes: int = 12 << 20, max_tile: int = 1024) -> int:
    """Largest seq tile (multiple of 8, dividing S) whose f32 temps fit the budget."""
    # Rough per-TS-row bytes: logits + exp + masked temps (3*TB rows of Vp f32)
    # plus double-buffered alpha/beta tiles (4 rows of Vp f32).
    per_ts = (3 * tb + 4) * vp * 4
    cap = int(max(8, min(max_tile, budget_bytes // max(per_ts, 1))))
    if seq_len <= cap:
        return seq_len
    best = None
    for ts in range(8, cap + 1, 8):
        if seq_len % ts == 0:
            best = ts
    # TODO(synk): awkward (e.g. prime) seq lengths fall back to a single block.
    return best if best is not None else seq_len


def _logp_partial_kernel(inp_ref, times_ref, alpha_ref, beta_ref, out_ref):
    # inp_ref   : (TB, TS, 1) int32   tokens for (batch block b, seq tile s)
    # times_ref : (TB, TS, 1) float32
    # alpha_ref : (TS, Vp)    float32
    # beta_ref  : (TS, Vp)    float32
    # out_ref   : (1, TB, 1)  float32  per-(seq-tile, batch-row) sum_s log_prob
    tb, ts, _ = inp_ref.shape
    vp = alpha_ref.shape[-1]

    alpha = alpha_ref[...]                       # (TS, Vp)
    beta = beta_ref[...]                         # (TS, Vp)
    t = times_ref[...]                           # (TB, TS, 1)
    tok = inp_ref[...]                           # (TB, TS, 1) int32

    # Fused logits -> (row max, exp-sum, gathered logit); no full log_probs tensor.
    logits = alpha[None, :, :] * t + beta[None, :, :]          # (TB, TS, Vp)
    m = jnp.max(logits, axis=-1, keepdims=True)                # (TB, TS, 1)  XLU
    e = jnp.exp(logits - m)                                    # (TB, TS, Vp) EUP

    col = lax.broadcasted_iota(jnp.int32, logits.shape, 2)     # (TB, TS, Vp)
    masked = jnp.where(col == tok, logits, 0.0)                # one-hot select

    # Offload the two remaining cross-lane reductions to the (idle) MXU as
    # mat-vec products with a ones column; only the row-max uses the XLU.
    ones_col = jnp.ones((vp, 1), jnp.float32)
    sum_e = jnp.dot(e.reshape(tb * ts, vp), ones_col,
                    preferred_element_type=jnp.float32).reshape(tb, ts, 1)
    gathered = jnp.dot(masked.reshape(tb * ts, vp), ones_col,
                       preferred_element_type=jnp.float32).reshape(tb, ts, 1)

    logp = (gathered - m) - jnp.log(sum_e)                     # (TB, TS, 1)
    out_ref[0] = jnp.sum(logp, axis=1)                         # (TB, 1)


def model_forward_loss(inp, times, loss_weight, alpha, beta):
    """Scalar training loss, computed in a tiled Pallas TPU kernel."""
    B, S = inp.shape
    S_a, V = alpha.shape
    assert S_a == S, "alpha/beta seq_len must match input seq_len"

    # Lane-dense vocab: pad V up to a multiple of 128.  Padded logit columns get
    # -1e30 (via beta) so they contribute 0 to the softmax denominator and are
    # never matched by the one-hot gather (token ids are < V).
    Vp = ((V + 127) // 128) * 128
    if Vp != V:
        alpha = jnp.pad(alpha, ((0, 0), (0, Vp - V)))
        beta = jnp.pad(beta, ((0, 0), (0, Vp - V)), constant_values=_NEG_LARGE)
    alpha = alpha.astype(jnp.float32)
    beta = beta.astype(jnp.float32)

    TB = _pick_batch_tile(B)
    TS = _pick_seq_tile(S, TB, Vp)
    n_s = S // TS
    n_b = B // TB

    # (B, S) -> (B, S, 1): last two block dims become (TS, 1) which satisfies
    # TPU tiling rules (TS multiple of 8 or == S; last dim equals full dim 1).
    inp3 = inp.astype(jnp.int32).reshape(B, S, 1)
    times3 = times.astype(jnp.float32).reshape(B, S, 1)

    partial = pl.pallas_call(
        _logp_partial_kernel,
        out_shape=jax.ShapeDtypeStruct((n_s, B, 1), jnp.float32),
        grid=(n_s, n_b),
        in_specs=[
            pl.BlockSpec((TB, TS, 1), lambda s, b: (b, s, 0)),   # tokens
            pl.BlockSpec((TB, TS, 1), lambda s, b: (b, s, 0)),   # times
            pl.BlockSpec((TS, Vp), lambda s, b: (s, 0)),         # alpha tile
            pl.BlockSpec((TS, Vp), lambda s, b: (s, 0)),         # beta tile
        ],
        out_specs=pl.BlockSpec((1, TB, 1), lambda s, b: (s, b, 0)),
        compiler_params=pltpu.CompilerParams(
            dimension_semantics=("parallel", "arbitrary")),
    )(inp3, times3, alpha, beta)

    # Final (tiny) reduction + weighting/normalization in XLA.
    row_logp = jnp.sum(partial[..., 0], axis=0)                  # (B,)
    w = loss_weight.reshape(B).astype(jnp.float32)
    return -jnp.sum(row_logp * w) / (jnp.float32(S) * jnp.sum(w))


def _reference_loss(inp, times, loss_weight, alpha, beta):
    logits = alpha[None] * times[..., None] + beta[None]
    log_probs = jax.nn.log_softmax(logits, axis=-1)
    log_prob = jnp.take_along_axis(log_probs, inp[..., None], axis=-1)[..., 0]
    nll = -jnp.mean(log_prob, axis=-1)
    w = loss_weight[..., 0]
    return jnp.sum(nll * w) / jnp.sum(w)


if __name__ == "__main__":
    B, S, V = 2, 8, 32   # batch, seq_len, len(vocab)

    key = jax.random.PRNGKey(0)
    k_a, k_b, k_t, k_i, k_w = jax.random.split(key, 5)

    # deterministic "parameters" (same shapes as the PyTorch nn.Parameters)
    alpha = jax.random.normal(k_a, (S, V), dtype=jnp.float32)
    beta = jax.random.normal(k_b, (S, V), dtype=jnp.float32)

    # deterministic inputs
    times = jax.random.uniform(k_t, (B, S), dtype=jnp.float32)
    inp = jax.random.randint(k_i, (B, S), 0, V, dtype=jnp.int32)
    loss_weight = jax.random.uniform(k_w, (B, 1), dtype=jnp.float32) + 0.5

    loss = jax.block_until_ready(
        model_forward_loss(inp, times, loss_weight, alpha, beta)
    )
    ref = _reference_loss(inp, times, loss_weight, alpha, beta)
    assert jnp.allclose(loss, ref, atol=1e-5, rtol=1e-5), (loss, ref)

    print("KERNEL_OK")
</pallas_src>

<mosaic_0001>
module attributes {stable_mosaic.version = 11 : i64} {
  func.func @_logp_partial_kernel(%arg0: i32, %arg1: i32, %arg2: memref<2x8x1xi32, #tpu.memory_space<vmem>>, %arg3: memref<2x8x1xf32, #tpu.memory_space<vmem>>, %arg4: memref<8x128xf32, #tpu.memory_space<vmem>>, %arg5: memref<8x128xf32, #tpu.memory_space<vmem>>, %arg6: memref<1x2x1xf32, #tpu.memory_space<vmem>>) attributes {dimension_semantics = [#tpu.dimension_semantics<parallel>, #tpu.dimension_semantics<arbitrary>], iteration_bounds = array<i64: 1, 1>, scalar_prefetch = 0 : i64, scratch_operands = 0 : i64, tpu.core_type = #tpu.core_type<tc>, window_params = [{transform_indices = @transform_0, window_bounds = array<i64: 2, 8, 1>}, {transform_indices = @transform_1, window_bounds = array<i64: 2, 8, 1>}, {transform_indices = @transform_2, window_bounds = array<i64: 8, 128>}, {transform_indices = @transform_3, window_bounds = array<i64: 8, 128>}, {transform_indices = @transform_4, window_bounds = array<i64: 1, 2, 1>}]} {
    %c0 = arith.constant 0 : index
    %c0_0 = arith.constant 0 : index
    %0 = vector.load %arg4[%c0, %c0_0] : memref<8x128xf32, #tpu.memory_space<vmem>>, vector<8x128xf32>
    %c0_1 = arith.constant 0 : index
    %c0_2 = arith.constant 0 : index
    %1 = vector.load %arg5[%c0_1, %c0_2] : memref<8x128xf32, #tpu.memory_space<vmem>>, vector<8x128xf32>
    %c0_3 = arith.constant 0 : index
    %c0_4 = arith.constant 0 : index
    %c0_5 = arith.constant 0 : index
    %2 = vector.load %arg3[%c0_3, %c0_4, %c0_5] : memref<2x8x1xf32, #tpu.memory_space<vmem>>, vector<2x8x1xf32>
    %c0_6 = arith.constant 0 : index
    %c0_7 = arith.constant 0 : index
    %c0_8 = arith.constant 0 : index
    %3 = vector.load %arg2[%c0_6, %c0_7, %c0_8] : memref<2x8x1xi32, #tpu.memory_space<vmem>>, vector<2x8x1xi32>
    %4 = vector.shape_cast %0 : vector<8x128xf32> to vector<1x8x128xf32>
    %5 = vector.broadcast %4 : vector<1x8x128xf32> to vector<2x8x128xf32>
    %6 = vector.broadcast %2 : vector<2x8x1xf32> to vector<2x8x128xf32>
    %7 = arith.mulf %5, %6 : vector<2x8x128xf32>
    %8 = vector.shape_cast %1 : vector<8x128xf32> to vector<1x8x128xf32>
    %9 = vector.broadcast %8 : vector<1x8x128xf32> to vector<2x8x128xf32>
    %10 = arith.addf %7, %9 : vector<2x8x128xf32>
    %cst = arith.constant dense<0xFF800000> : vector<2x8xf32>
    %11 = vector.multi_reduction <maximumf>, %10, %cst [2] : vector<2x8x128xf32> to vector<2x8xf32>
    %12 = vector.shape_cast %11 : vector<2x8xf32> to vector<2x8x1xf32>
    %13 = vector.broadcast %12 : vector<2x8x1xf32> to vector<2x8x128xf32>
    %14 = arith.subf %10, %13 : vector<2x8x128xf32>
    %15 = math.exp %14 : vector<2x8x128xf32>
    %16 = tpu.iota {dimensions = array<i32: 2>} : vector<2x8x128xi32>
    %17 = vector.broadcast %3 : vector<2x8x1xi32> to vector<2x8x128xi32>
    %18 = arith.cmpi eq, %16, %17 : vector<2x8x128xi32>
    %cst_9 = arith.constant 0.000000e+00 : f32
    %19 = vector.broadcast %cst_9 : f32 to vector<2x8x128xf32>
    %20 = arith.select %18, %10, %19 : vector<2x8x128xi1>, vector<2x8x128xf32>
    %cst_10 = arith.constant 1.000000e+00 : f32
    %21 = vector.broadcast %cst_10 : f32 to vector<128x1xf32>
    %22 = vector.shape_cast %15 : vector<2x8x128xf32> to vector<16x128xf32>
    %cst_11 = arith.constant dense<0.000000e+00> : vector<16x1xf32>
    %23 = tpu.matmul %22, %21, %cst_11 {dimension_numbers = #tpu.dot_dimension_numbers<[1], [0], [0], [1], [0, 0, 1, 1], [], []>} : vector<16x128xf32>, vector<128x1xf32>, vector<16x1xf32> -> vector<16x1xf32>
    %24 = vector.shape_cast %23 : vector<16x1xf32> to vector<2x8x1xf32>
    %25 = vector.shape_cast %20 : vector<2x8x128xf32> to vector<16x128xf32>
    %cst_12 = arith.constant dense<0.000000e+00> : vector<16x1xf32>
    %26 = tpu.matmul %25, %21, %cst_12 {dimension_numbers = #tpu.dot_dimension_numbers<[1], [0], [0], [1], [0, 0, 1, 1], [], []>} : vector<16x128xf32>, vector<128x1xf32>, vector<16x1xf32> -> vector<16x1xf32>
    %27 = vector.shape_cast %26 : vector<16x1xf32> to vector<2x8x1xf32>
    %28 = arith.subf %27, %12 : vector<2x8x1xf32>
    %29 = math.log %24 : vector<2x8x1xf32>
    %30 = arith.subf %28, %29 : vector<2x8x1xf32>
    %cst_13 = arith.constant dense<0.000000e+00> : vector<2x1xf32>
    %31 = vector.multi_reduction <add>, %30, %cst_13 [1] : vector<2x8x1xf32> to vector<2x1xf32>
    %c0_14 = arith.constant 0 : index
    %c0_15 = arith.constant 0 : index
    %c0_16 = arith.constant 0 : index
    %32 = vector.load %arg6[%c0_14, %c0_15, %c0_16] : memref<1x2x1xf32, #tpu.memory_space<vmem>>, vector<1x2x1xf32>
    %33 = vector.shape_cast %32 : vector<1x2x1xf32> to vector<2x1xf32>
    %34 = vector.shape_cast %31 : vector<2x1xf32> to vector<1x2x1xf32>
    tpu.vector_store %arg6[%c0_14, %c0_15, %c0_16], %34 {strides = array<i32>} : memref<1x2x1xf32, #tpu.memory_space<vmem>>, vector<1x2x1xf32>,
    return
  }
  func.func @transform_0(%arg0: i32, %arg1: i32) -> (i32, i32, i32) {
    %c0_i32 = arith.constant 0 : i32
    %c0_i32_0 = arith.constant 0 : i32
    return %arg1, %arg0, %c0_i32 : i32, i32, i32
  }
  func.func @transform_1(%arg0: i32, %arg1: i32) -> (i32, i32, i32) {
    %c0_i32 = arith.constant 0 : i32
    %c0_i32_0 = arith.constant 0 : i32
    return %arg1, %arg0, %c0_i32 : i32, i32, i32
  }
  func.func @transform_2(%arg0: i32, %arg1: i32) -> (i32, i32) {
    %c0_i32 = arith.constant 0 : i32
    %c0_i32_0 = arith.constant 0 : i32
    return %arg0, %c0_i32 : i32, i32
  }
  func.func @transform_3(%arg0: i32, %arg1: i32) -> (i32, i32) {
    %c0_i32 = arith.constant 0 : i32
    %c0_i32_0 = arith.constant 0 : i32
    return %arg0, %c0_i32 : i32, i32
  }
  func.func @transform_4(%arg0: i32, %arg1: i32) -> (i32, i32, i32) {
    %c0_i32 = arith.constant 0 : i32
    %c0_i32_0 = arith.constant 0 : i32
    return %arg0, %arg1, %c0_i32 : i32, i32, i32
  }
}

</mosaic_0001>

<llo_original>
// kernel: tpu_custom_call.1
$region0: #{tpu_custom_call.1}
  #allocation0 [shape = 'u32[]', space=smem, size = 0x4, offset = 0x4, fixed_abs, tag = 'smem constant byte address 0x4 - core index']
  #allocation1 [shape = 'u32[144,128]{1,0:T(1,128)}', space=vmem, size = 0x12000, scoped, tag = 'internal scratch']
  %s0 = inlined_call_operand.vmem [shape: s32[2,8,1], index: 0, kind: input, shape index: {}]
  %s1 = inlined_call_operand.vmem [shape: f32[2,8,1], index: 1, kind: input, shape index: {}]
  %s2 = inlined_call_operand.vmem [shape: f32[8,128], index: 2, kind: input, shape index: {}]
  %s3 = inlined_call_operand.vmem [shape: f32[8,128], index: 3, kind: input, shape index: {}]
  %s4 = inlined_call_operand.vmem [shape: f32[1,2,1], index: 4, kind: output, shape index: {}]
  %s5 = sld [smem:[#allocation0]]
  $region26: #{tpu_custom_call.1} parent=0
    _
  %s7 = ssub.s32 1, %s5
  %s8 = scalar_select 0, %s7, %s5
  // Predicated region
  $region2: #{tpu_custom_call.1} parent=0 // pred_check
    _
  $region3: #{tpu_custom_call.1} parent=0 // pred_check_branch
    %10 = sbr.rel (0) target = $region5
  $region4: #{tpu_custom_call.1} parent=0 // pred_region
    _
  $region5: #{tpu_custom_call.1} parent=0 // pred_fallthru
    _
  // Predicated region
  $region6: #{tpu_custom_call.1} parent=0 // pred_check
    _
  $region7: #{tpu_custom_call.1} parent=0 // pred_check_branch
    %12 = sbr.rel (0) target = $region9
  $region8: #{tpu_custom_call.1} parent=0 // pred_region
    _
  $region9: #{tpu_custom_call.1} parent=0 // pred_fallthru
    _
  // Predicated region
  $region10: #{tpu_custom_call.1} parent=0 // pred_check
    _
  $region11: #{tpu_custom_call.1} parent=0 // pred_check_branch
    %14 = sbr.rel (0) target = $region13
  $region12: #{tpu_custom_call.1} parent=0 // pred_region
    _
  $region13: #{tpu_custom_call.1} parent=0 // pred_fallthru
    _
  // Predicated region
  $region14: #{tpu_custom_call.1} parent=0 // pred_check
    _
  $region15: #{tpu_custom_call.1} parent=0 // pred_check_branch
    %16 = sbr.rel (0) target = $region17
  $region16: #{tpu_custom_call.1} parent=0 // pred_region
    _
  $region17: #{tpu_custom_call.1} parent=0 // pred_fallthru
    _
  %v17 = vld [vmem:[%s2] sm:$0xff]
  %v18 = vld [vmem:[%s3] sm:$0xff]
  %v19 = vld [vmem:[%s1] sm:$0xff]
  %v20 = vld [vmem:[%s1 + $0x8] sm:$0xff]
  %v21 = vld [vmem:[%s0] sm:$0xff]
  %v22 = vld [vmem:[%s0 + $0x8] sm:$0xff]
  %24 = vset.pattern.permute.xlu0 0
  %25 = vperm.xlu0 %24, %v19
  %v26 = vpop.permute.xlu0 %25
  %29 = vset.pattern.permute.xlu0 0
  %30 = vperm.xlu0 %29, %v20
  %v31 = vpop.permute.xlu0 %30
  %v33 = vmul.f32 %v17, %v26
  %v34 = vmul.f32 %v17, %v31
  %v35 = vadd.f32 %v33, %v18
  %v36 = vadd.f32 %v34, %v18
  %37 = vmax.xlane.f32.xlu0 %v35
  %v38 = vpop.xlane.xlu0 %37
  %39 = vmax.xlane.f32.xlu0 %v36
  %v40 = vpop.xlane.xlu0 %39
  %v41 = vsub.f32 %v35, %v38
  %v42 = vsub.f32 %v36, %v40
  %v43 = vmul.f32 %v41, 1.442695
  %v44 = vpow.pop %v43
  %v45 = vmul.f32 %v42, 1.442695
  %v46 = vpow.pop %v45
  %v47 = vlaneseq
  %v48 = vand.u32 %v47, 127
  %49 = vset.pattern.permute.xlu0 0
  %50 = vperm.xlu0 %49, %v21
  %v51 = vpop.permute.xlu0 %50
  %52 = vset.pattern.permute.xlu0 0
  %53 = vperm.xlu0 %52, %v22
  %v54 = vpop.permute.xlu0 %53
  %vm55 = vcmp.eq.s32.totalorder %v48, %v51
  %vm56 = vcmp.eq.s32.totalorder %v48, %v54
  %v57 = vsel %vm55, %v35, 0.0
  %v58 = vsel %vm56, %v36, 0.0
  %59 = vmatprep.subr.mxu0 0.0
  %60 = vmatpush1.msra.mxu0 1.0
  %61 = vmatprep.subr.mxu0 0.0
  %62 = vmatpush1.msra.mxu0 1.0
  %63 = vmatprep.subr.mxu0 0.0
  %64 = vmatpush1.msra.mxu0 1.0
  %65 = vmatprep.subr.mxu0 0.0
  %66 = vmatpush1.msra.mxu0 1.0
  %67 = vmatprep.subr.mxu0 0.0
  %68 = vmatpush1.msra.mxu0 1.0
  %69 = vmatprep.subr.mxu0 0.0
  %70 = vmatpush1.msra.mxu0 1.0
  %71 = vmatprep.subr.mxu0 0.0
  %72 = vmatpush1.msra.mxu0 1.0
  %73 = vmatprep.subr.mxu0 0.0
  %74 = vmatpush1.msra.mxu0 1.0
  %75 = vmatprep.subr.mxu0 0.0
  %76 = vmatpush1.msra.mxu0 1.0
  %77 = vmatprep.subr.mxu0 0.0
  %78 = vmatpush1.msra.mxu0 1.0
  %79 = vmatprep.subr.mxu0 0.0
  %80 = vmatpush1.msra.mxu0 1.0
  %81 = vmatprep.subr.mxu0 0.0
  %82 = vmatpush1.msra.mxu0 1.0
  %83 = vmatprep.subr.mxu0 0.0
  %84 = vmatpush1.msra.mxu0 1.0
  %85 = vmatprep.subr.mxu0 0.0
  %86 = vmatpush1.msra.mxu0 1.0
  %87 = vmatprep.subr.mxu0 0.0
  %88 = vmatpush1.msra.mxu0 1.0
  %89 = vmatprep.subr.mxu0 0.0
  %90 = vmatpush1.msra.mxu0 1.0
  %91 = vmatprep.subr.mxu0 0.0
  %92 = vmatpush1.msra.mxu0 0.0
  %93 = vmatprep.subr.mxu0 0.0
  %94 = vmatpush1.msra.mxu0 0.0
  %95 = vmatprep.subr.mxu0 0.0
  %96 = vmatpush1.msra.mxu0 0.0
  %97 = vmatprep.subr.mxu0 0.0
  %98 = vmatpush1.msra.mxu0 0.0
  %99 = vmatprep.subr.mxu0 0.0
  %100 = vmatpush1.msra.mxu0 0.0
  %101 = vmatprep.subr.mxu0 0.0
  %102 = vmatpush1.msra.mxu0 0.0
  %103 = vmatprep.subr.mxu0 0.0
  %104 = vmatpush1.msra.mxu0 0.0
  %105 = vmatprep.subr.mxu0 0.0
  %106 = vmatpush1.msra.mxu0 0.0
  %107 = vmatprep.subr.mxu0 0.0
  %108 = vmatpush1.msra.mxu0 0.0
  %109 = vmatprep.subr.mxu0 0.0
  %110 = vmatpush1.msra.mxu0 0.0
  %111 = vmatprep.subr.mxu0 0.0
  %112 = vmatpush1.msra.mxu0 0.0
  %113 = vmatprep.subr.mxu0 0.0
  %114 = vmatpush1.msra.mxu0 0.0
  %115 = vmatprep.subr.mxu0 0.0
  %116 = vmatpush1.msra.mxu0 0.0
  %117 = vmatprep.subr.mxu0 0.0
  %118 = vmatpush1.msra.mxu0 0.0
  %119 = vmatprep.subr.mxu0 0.0
  %120 = vmatpush1.msra.mxu0 0.0
  %121 = vmatprep.subr.mxu0 0.0
  %122 = vmatpush1.msra.mxu0 0.0
  %123 = vmatprep.mubr.f32.mxu0 0.0
  %124 = vmatmul.mubr.f32.gmra.mrb[0].mxu0 %v44
  %v125 = vpop.f32.mrb[0].mxu0
  %v126 = vadd.f32 0.0, %v125
  %v127 = vpop.f32.mrb[0].mxu0
  %128 = vmatprep.mubr.f32.mxu0 0.0
  %129 = vmatmul.mubr.f32.gmra.mrb[0].mxu0 %v46
  %v130 = vpop.f32.mrb[0].mxu0
  %v131 = vadd.f32 0.0, %v130
  %v132 = vpop.f32.mrb[0].mxu0
  %133 = vdwg.mxu0
  %134 = vmatprep.subr.mxu0 0.0
  %135 = vmatpush1.msra.mxu0 1.0
  %136 = vmatprep.subr.mxu0 0.0
  %137 = vmatpush1.msra.mxu0 1.0
  %138 = vmatprep.subr.mxu0 0.0
  %139 = vmatpush1.msra.mxu0 1.0
  %140 = vmatprep.subr.mxu0 0.0
  %141 = vmatpush1.msra.mxu0 1.0
  %142 = vmatprep.subr.mxu0 0.0
  %143 = vmatpush1.msra.mxu0 1.0
  %144 = vmatprep.subr.mxu0 0.0
  %145 = vmatpush1.msra.mxu0 1.0
  %146 = vmatprep.subr.mxu0 0.0
  %147 = vmatpush1.msra.mxu0 1.0
  %148 = vmatprep.subr.mxu0 0.0
  %149 = vmatpush1.msra.mxu0 1.0
  %150 = vmatprep.subr.mxu0 0.0
  %151 = vmatpush1.msra.mxu0 1.0
  %152 = vmatprep.subr.mxu0 0.0
  %153 = vmatpush1.msra.mxu0 1.0
  %154 = vmatprep.subr.mxu0 0.0
  %155 = vmatpush1.msra.mxu0 1.0
  %156 = vmatprep.subr.mxu0 0.0
  %157 = vmatpush1.msra.mxu0 1.0
  %158 = vmatprep.subr.mxu0 0.0
  %159 = vmatpush1.msra.mxu0 1.0
  %160 = vmatprep.subr.mxu0 0.0
  %161 = vmatpush1.msra.mxu0 1.0
  %162 = vmatprep.subr.mxu0 0.0
  %163 = vmatpush1.msra.mxu0 1.0
  %164 = vmatprep.subr.mxu0 0.0
  %165 = vmatpush1.msra.mxu0 1.0
  %166 = vmatprep.subr.mxu0 0.0
  %167 = vmatpush1.msra.mxu0 0.0
  %168 = vmatprep.subr.mxu0 0.0
  %169 = vmatpush1.msra.mxu0 0.0
  %170 = vmatprep.subr.mxu0 0.0
  %171 = vmatpush1.msra.mxu0 0.0
  %172 = vmatprep.subr.mxu0 0.0
  %173 = vmatpush1.msra.mxu0 0.0
  %174 = vmatprep.subr.mxu0 0.0
  %175 = vmatpush1.msra.mxu0 0.0
  %176 = vmatprep.subr.mxu0 0.0
  %177 = vmatpush1.msra.mxu0 0.0
  %178 = vmatprep.subr.mxu0 0.0
  %179 = vmatpush1.msra.mxu0 0.0
  %180 = vmatprep.subr.mxu0 0.0
  %181 = vmatpush1.msra.mxu0 0.0
  %182 = vmatprep.subr.mxu0 0.0
  %183 = vmatpush1.msra.mxu0 0.0
  %184 = vmatprep.subr.mxu0 0.0
  %185 = vmatpush1.msra.mxu0 0.0
  %186 = vmatprep.subr.mxu0 0.0
  %187 = vmatpush1.msra.mxu0 0.0
  %188 = vmatprep.subr.mxu0 0.0
  %189 = vmatpush1.msra.mxu0 0.0
  %190 = vmatprep.subr.mxu0 0.0
  %191 = vmatpush1.msra.mxu0 0.0
  %192 = vmatprep.subr.mxu0 0.0
  %193 = vmatpush1.msra.mxu0 0.0
  %194 = vmatprep.subr.mxu0 0.0
  %195 = vmatpush1.msra.mxu0 0.0
  %196 = vmatprep.subr.mxu0 0.0
  %197 = vmatpush1.msra.mxu0 0.0
  %198 = vmatprep.mubr.f32.mxu0 0.0
  %199 = vmatmul.mubr.f32.gmra.mrb[0].mxu0 %v57
  %v200 = vpop.f32.mrb[0].mxu0
  %v201 = vadd.f32 0.0, %v200
  %v202 = vpop.f32.mrb[0].mxu0
  %203 = vmatprep.mubr.f32.mxu0 0.0
  %204 = vmatmul.mubr.f32.gmra.mrb[0].mxu0 %v58
  %v205 = vpop.f32.mrb[0].mxu0
  %v206 = vadd.f32 0.0, %v205
  %v207 = vpop.f32.mrb[0].mxu0
  %208 = vdwg.mxu0
  %v209 = vsub.f32 %v201, %v38
  %v210 = vsub.f32 %v206, %v40
  %v211 = vlog2.pop %v126
  %v212 = vmul.f32 %v211, 0.6931472
  %v213 = vlog2.pop %v131
  %v214 = vmul.f32 %v213, 0.6931472
  %v215 = vsub.f32 %v209, %v212
  %v216 = vsub.f32 %v210, %v214
  %vm217 = vcmask 7168
  %v218 = vsel %vm217, %v215, 0.0
  %v219 = vrot.slane %v218, 4
  %v220 = vadd.f32 %v218, %v219
  %v221 = vrot.slane %v220, 2
  %v222 = vadd.f32 %v220, %v221
  %v223 = vrot.slane %v222, 1
  %v224 = vadd.f32 %v222, %v223
  %v225 = vsel %vm217, %v216, 0.0
  %v226 = vrot.slane %v225, 4
  %v227 = vadd.f32 %v225, %v226
  %v228 = vrot.slane %v227, 2
  %v229 = vadd.f32 %v227, %v228
  %v230 = vrot.slane %v229, 1
  %v231 = vadd.f32 %v229, %v230
  %vm234 = vcmask 1041409
  %v235 = vsel %vm234, %v231, %v224
  %vm237 = vcmask 1024
  %238 = vst.msk [vmem:[%s4] sm:$0x3] %vm237, %v235
  // Predicated region
  $region18: #{tpu_custom_call.1} parent=0 // pred_check
    _
  $region19: #{tpu_custom_call.1} parent=0 // pred_check_branch
    %240 = sbr.rel (0) target = $region21
  $region20: #{tpu_custom_call.1} parent=0 // pred_region
    _
  $region21: #{tpu_custom_call.1} parent=0 // pred_fallthru
    _
  // Predicated region
  $region22: #{tpu_custom_call.1} parent=0 // pred_check
    _
  $region23: #{tpu_custom_call.1} parent=0 // pred_check_branch
    %242 = sbr.rel (0) target = $region25
  $region24: #{tpu_custom_call.1} parent=0 // pred_region
    _
  $region25: #{tpu_custom_call.1} parent=0 // pred_fallthru
    _

</llo_original>
